<compile_context>
chip_gen: v7x
topology: tpu7x:2x2x1
jax: 0.10.0
libtpu: 0.0.40
codegen_flags: <defaults>
</compile_context>

<pallas_src>
import math
from functools import partial

import jax
import jax.numpy as jnp
from jax.experimental import pallas as pl
from jax.experimental.pallas import tpu as pltpu


_LANES = 128


def _round_up(x: int, m: int) -> int:
    return ((x + m - 1) // m) * m


def _cdiv(a: int, b: int) -> int:
    return -(-a // b)


def _masker_kernel(*refs, r, q, hop, win, tile_l, n_groups, left_ext,
                   needs_prev, needs_next):
    """Computes one tile of output frames.

    refs = ([prev_ref], main_ref, [next_ref], o_ref, h_ref)
      prev_ref: (B, EXT, hop)    hop-groups just left of this tile's strip
      main_ref: (B, tile_l, hop) hop-groups [j*tile_l, (j+1)*tile_l)
      next_ref: (B, EXT, hop)    hop-groups just right of the strip
      o_ref:    (B, tile_l, 1)   mel-mask frames of this tile (f32)
      h_ref:    (B, left_ext + tile_l + right_ext, 128) f32 group-sum scratch
    """
    h_ref = refs[-1]
    o_ref = refs[-2]
    ins = refs[:-2]
    idx = 0
    prev_ref = None
    next_ref = None
    if needs_prev:
        prev_ref = ins[idx]
        idx += 1
    main_ref = ins[idx]
    idx += 1
    if needs_next:
        next_ref = ins[idx]
        idx += 1

    # Hop-group sums on the MXU: (rows, hop) @ (hop, 128) with f32
    # accumulation.  All 128 result lanes are identical; lane 0 is used later.
    # This keeps the reduction off the XLU (a lane-axis jnp.sum would bind the
    # kernel on v6e/v7x).  The bf16 LHS cast is exact for {0,1} masks.
    ones_rhs = jnp.ones((hop, _LANES), jnp.bfloat16)

    def group_sums(ref):
        x = ref[...]
        b, g, _ = x.shape
        y = jnp.dot(x.reshape(b * g, hop).astype(jnp.bfloat16), ones_rhs,
                    preferred_element_type=jnp.float32)
        return y.reshape(b, g, _LANES)

    if needs_prev:
        h_ref[:, 0:left_ext, :] = group_sums(prev_ref)
    h_ref[:, left_ext:left_ext + tile_l, :] = group_sums(main_ref)
    if needs_next:
        h_ref[:, left_ext + tile_l:, :] = group_sums(next_ref)

    j = pl.program_id(0)
    width = h_ref.shape[1]

    # Zero out group sums whose global hop-group index falls outside the real
    # data: indices < 0 are the analytic left ones-pad region (added below),
    # indices >= n_groups are the right zeros-pad / partial-block garbage.
    c = jax.lax.broadcasted_iota(jnp.int32, (1, width, 1), 1)
    g_global = j * tile_l - left_ext + c
    valid = jnp.logical_and(g_global >= 0, g_global < n_groups)
    h = jnp.where(valid, h_ref[...], 0.0)

    # Window sum for local frame f = sum of r adjacent group sums starting at
    # combined index f + left_ext - q.
    # TODO(synk): use a log-step sliding sum if r ever gets large (> ~8).
    base = left_ext - q
    acc = h[:, base:base + tile_l, :]
    for u in range(1, r):
        acc = acc + h[:, base + u:base + u + tile_l, :]

    # Analytic left ones-pad: frame f overlaps hop*max(0, q - f) padding ones
    # (only the first q frames of the whole output; zero for every tile j>=1).
    f_global = j * tile_l + jax.lax.broadcasted_iota(
        jnp.int32, (1, tile_l, 1), 1)
    ones_cnt = (jnp.maximum(q - f_global, 0) * hop).astype(jnp.float32)

    win_sum = acc[:, :, 0:1] + ones_cnt
    # True division keeps ceil() exact for integer window sums even when 1/W
    # is not representable (e.g. W=400).
    o_ref[...] = jnp.ceil(win_sum / float(win))


def _pick_tile_frames(L, bytes_per_frame_row, ext, multi_core):
    """Frames per grid step: ~2 MiB input strips, multiple of `ext`."""
    target = 2 << 20
    rows = max(ext, ((target // max(bytes_per_frame_row, 1)) // ext) * ext)
    rows = min(rows, _round_up(L, ext))
    if multi_core and L > 4 * ext:
        # Two TensorCores per chip: prefer >=4 grid steps for balance when
        # that still leaves reasonably sized strips.
        if _cdiv(L, rows) < 4:
            alt = max(ext, _round_up(_cdiv(L, 4), ext))
            if alt * bytes_per_frame_row >= (256 << 10):
                rows = min(rows, alt)
    return rows


@partial(jax.jit, static_argnames=("win_length", "hop_length", "block_frames"))
def spectrogram_mask(wav_mask, *, win_length, hop_length, block_frames=None):
    """ceil(Conv1d(pad(wav_mask), weight=1/W, stride=hop)) as a Pallas kernel."""
    assert wav_mask.ndim == 2, "wav_mask must be [B, T]"
    W, H = win_length, hop_length
    if W % H != 0:
        # TODO(synk): support win_length not divisible by hop_length.
        raise NotImplementedError("win_length must be a multiple of hop_length")
    B, T = wav_mask.shape
    half = W // 2
    q, s = divmod(half, H)            # whole hop-groups / remainder of left pad
    r = W // H                        # hop-groups per conv window
    L = (T + 2 * half - W) // H + 1   # Conv1d output length

    # View the signal as hop-groups.  When the left pad is hop-aligned (s == 0,
    # true for the module defaults win=2*hop) and T is a hop multiple, this is
    # a free bitcast reshape -- the kernel reads wav_mask straight from HBM.
    # Otherwise a single small pad (caller dtype) restores group alignment.
    if s == 0 and T % H == 0 and T >= H:
        groups = wav_mask.reshape(B, T // H, H)
    else:
        pad_r = (-(s + T)) % H
        padded = jnp.pad(wav_mask, ((0, 0), (s, pad_r)),
                         constant_values=((0, 0), (1, 0)))
        groups = padded.reshape(B, (s + T + pad_r) // H, H)
    n_groups = groups.shape[1]

    needs_prev = q > 0                # frames reach q groups left of the tile
    needs_next = (r - 1 - q) > 0      # ... and r-1-q groups right of it
    ext = _round_up(max(q, r - 1 - q, 1), 8)
    left_ext = ext if needs_prev else 0
    right_ext = ext if needs_next else 0

    kind = getattr(jax.devices()[0], "device_kind", "").lower()
    multi_core = any(t in kind for t in ("v4", "v5p", "v7", "7x"))

    itemsize = jnp.dtype(wav_mask.dtype).itemsize
    bytes_per_frame_row = B * H * itemsize
    if block_frames is not None:
        tile_l = _round_up(block_frames, ext)
    else:
        tile_l = _pick_tile_frames(L, bytes_per_frame_row, ext, multi_core)
    num_tiles = _cdiv(L, tile_l)
    l_pad = num_tiles * tile_l

    k_blocks = tile_l // ext
    nb_main = _cdiv(n_groups, tile_l)
    nb_ext = _cdiv(n_groups, ext)

    in_specs = []
    inputs = []
    if needs_prev:
        in_specs.append(pl.BlockSpec(
            (B, ext, H),
            lambda j: (0, jnp.minimum(jnp.maximum(j * k_blocks - 1, 0),
                                      nb_ext - 1), 0)))
        inputs.append(groups)
    in_specs.append(pl.BlockSpec(
        (B, tile_l, H), lambda j: (0, jnp.minimum(j, nb_main - 1), 0)))
    inputs.append(groups)
    if needs_next:
        in_specs.append(pl.BlockSpec(
            (B, ext, H),
            lambda j: (0, jnp.minimum((j + 1) * k_blocks, nb_ext - 1), 0)))
        inputs.append(groups)

    kernel = partial(_masker_kernel, r=r, q=q, hop=H, win=W, tile_l=tile_l,
                     n_groups=n_groups, left_ext=left_ext,
                     needs_prev=needs_prev, needs_next=needs_next)

    # VMEM budget: double-buffered input/output blocks + group-sum scratch +
    # compiler temporaries for the masked / shifted sums.
    main_block = B * tile_l * H * itemsize
    ext_block = B * (left_ext + right_ext) * H * itemsize
    out_block = B * tile_l * 4
    scratch = B * (left_ext + tile_l + right_ext) * _LANES * 4
    vmem_limit = int(2 * (main_block + ext_block + out_block)
                     + 4 * scratch + (8 << 20))
    vmem_limit = min(max(vmem_limit, 24 << 20), 64 << 20)

    cost = pl.CostEstimate(
        flops=2 * B * l_pad * (W + r),
        transcendentals=0,
        bytes_accessed=(B * n_groups * H * itemsize
                        + num_tiles * ext_block
                        + B * l_pad * 4))

    out = pl.pallas_call(
        kernel,
        out_shape=jax.ShapeDtypeStruct((B, l_pad, 1), jnp.float32),
        grid=(num_tiles,),
        in_specs=in_specs,
        out_specs=pl.BlockSpec((B, tile_l, 1), lambda j: (0, j, 0)),
        scratch_shapes=[
            pltpu.VMEM((B, left_ext + tile_l + right_ext, _LANES),
                       jnp.float32)],
        compiler_params=pltpu.CompilerParams(
            # "parallel" lets megacore chips shard the frame-tile axis.
            # TODO(synk): evaluate pltpu.CORE_PARALLEL / core_map on v7x.
            dimension_semantics=("parallel",),
            vmem_limit_bytes=vmem_limit),
        cost_estimate=cost,
    )(*inputs)

    return out[:, :L, 0]


class SpectrogramMaskerPallas:
    """JAX/Pallas equivalent of the PyTorch SpectrogramMasker module."""

    def __init__(self, win_length: int = 400, hop_length: int = 200):
        # Conv1d(1,1,W,stride=hop,bias=False) with constant weight 1/W is
        # folded into the kernel as a windowed mean + ceil.
        self.win_length = win_length
        self.hop_length = hop_length

    def __call__(self, wav_mask, block_frames=None):
        # The kernel consumes the caller's dtype directly (no f32 upcast).
        # Group sums use a bf16 MXU matmul -- exact for {0,1} masks.
        return spectrogram_mask(wav_mask,
                                win_length=self.win_length,
                                hop_length=self.hop_length,
                                block_frames=block_frames)


def _reference(wav_mask, win_length, hop_length):
    # Pure-JAX reference of the PyTorch forward (cumsum-based windowed mean).
    wav_mask = wav_mask.astype(jnp.float32)
    half = win_length // 2
    padded = jnp.pad(wav_mask, ((0, 0), (half, half)),
                     constant_values=((0.0, 0.0), (1.0, 0.0)))
    B, t_pad = padded.shape
    L = (t_pad - win_length) // hop_length + 1
    csum = jnp.concatenate(
        [jnp.zeros((B, 1), jnp.float32), jnp.cumsum(padded, axis=1)], axis=1)
    starts = jnp.arange(L) * hop_length
    window_sums = csum[:, starts + win_length] - csum[:, starts]
    return jnp.ceil(window_sums / win_length)


if __name__ == "__main__":
    key = jax.random.PRNGKey(0)

    def check(win_length, hop_length, B, T, subkey, block_frames=None):
        wav = (jax.random.uniform(subkey, (B, T)) > 0.5).astype(jnp.float32)
        # carve out an all-zero region so both 0 and 1 outputs are exercised
        z = min(T // 2, 4 * win_length)
        wav = wav.at[:, T // 4:T // 4 + z].set(0.0)
        masker = SpectrogramMaskerPallas(win_length, hop_length)
        out = jax.block_until_ready(masker(wav, block_frames=block_frames))
        ref = _reference(wav, win_length, hop_length)
        assert out.shape == ref.shape, (out.shape, ref.shape)
        assert bool(jnp.allclose(out, ref, atol=1e-6)), (
            f"mismatch for W={win_length} hop={hop_length} T={T}")

    # toy shape, zero-copy fast path, single tile
    check(16, 8, 2, 64, jax.random.fold_in(key, 0))
    # module defaults (win=400, hop=200) at a short length
    check(400, 200, 2, 1000, jax.random.fold_in(key, 1))
    # multi-tile grid: exercises the cross-tile prev-block path and the masked
    # partial last block
    check(16, 8, 2, 4168, jax.random.fold_in(key, 2), block_frames=128)
    # odd win/hop ratio -> small-pad fallback, both prev and next extra blocks
    check(24, 8, 2, 100, jax.random.fold_in(key, 3))
    # win == hop (no prev/next blocks) and T not a hop multiple
    check(8, 8, 2, 60, jax.random.fold_in(key, 4))
    # bf16 input path (no upcast in the wrapper)
    wav_b = (jax.random.uniform(jax.random.fold_in(key, 5), (2, 512)) > 0.5)
    masker_b = SpectrogramMaskerPallas(16, 8)
    out_b = jax.block_until_ready(masker_b(wav_b.astype(jnp.bfloat16)))
    ref_b = _reference(wav_b.astype(jnp.float32), 16, 8)
    assert bool(jnp.allclose(out_b, ref_b, atol=1e-6))

    print("KERNEL_OK")
</pallas_src>

<mosaic_0001>
module attributes {stable_mosaic.version = 11 : i64} {
  func.func @_masker_kernel(%arg0: i32, %arg1: memref<2x8x8xf32, #tpu.memory_space<vmem>>, %arg2: memref<2x16x8xf32, #tpu.memory_space<vmem>>, %arg3: memref<2x16x1xf32, #tpu.memory_space<vmem>>, %arg4: memref<2x24x128xf32, #tpu.memory_space<vmem>>) attributes {dimension_semantics = [#tpu.dimension_semantics<parallel>], iteration_bounds = array<i64: 1>, scalar_prefetch = 0 : i64, scratch_operands = 1 : i64, tpu.core_type = #tpu.core_type<tc>, window_params = [{transform_indices = @transform_0, window_bounds = array<i64: 2, 8, 8>}, {transform_indices = @transform_1, window_bounds = array<i64: 2, 16, 8>}, {transform_indices = @transform_2, window_bounds = array<i64: 2, 16, 1>}]} {
    %cst = arith.constant 1.000000e+00 : bf16
    %0 = vector.broadcast %cst : bf16 to vector<8x128xbf16>
    %c0 = arith.constant 0 : index
    %c0_0 = arith.constant 0 : index
    %c0_1 = arith.constant 0 : index
    %1 = vector.load %arg1[%c0, %c0_0, %c0_1] : memref<2x8x8xf32, #tpu.memory_space<vmem>>, vector<2x8x8xf32>
    %2 = vector.shape_cast %1 : vector<2x8x8xf32> to vector<16x8xf32>
    %3 = arith.truncf %2 : vector<16x8xf32> to vector<16x8xbf16>
    %cst_2 = arith.constant dense<0.000000e+00> : vector<16x128xf32>
    %4 = tpu.matmul %3, %0, %cst_2 {dimension_numbers = #tpu.dot_dimension_numbers<[1], [0], [0], [1], [0, 0, 1, 1], [], []>} : vector<16x8xbf16>, vector<8x128xbf16>, vector<16x128xf32> -> vector<16x128xf32>
    %5 = vector.shape_cast %4 : vector<16x128xf32> to vector<2x8x128xf32>
    %c0_3 = arith.constant 0 : index
    %c0_4 = arith.constant 0 : index
    %c0_5 = arith.constant 0 : index
    %6 = vector.load %arg4[%c0_3, %c0_4, %c0_5] : memref<2x24x128xf32, #tpu.memory_space<vmem>>, vector<2x8x128xf32>
    tpu.vector_store %arg4[%c0_3, %c0_4, %c0_5], %5 {strides = array<i32>} : memref<2x24x128xf32, #tpu.memory_space<vmem>>, vector<2x8x128xf32>,
    %c0_6 = arith.constant 0 : index
    %c0_7 = arith.constant 0 : index
    %c0_8 = arith.constant 0 : index
    %7 = vector.load %arg2[%c0_6, %c0_7, %c0_8] : memref<2x16x8xf32, #tpu.memory_space<vmem>>, vector<2x16x8xf32>
    %8 = vector.shape_cast %7 : vector<2x16x8xf32> to vector<32x8xf32>
    %9 = arith.truncf %8 : vector<32x8xf32> to vector<32x8xbf16>
    %cst_9 = arith.constant dense<0.000000e+00> : vector<32x128xf32>
    %10 = tpu.matmul %9, %0, %cst_9 {dimension_numbers = #tpu.dot_dimension_numbers<[1], [0], [0], [1], [0, 0, 1, 1], [], []>} : vector<32x8xbf16>, vector<8x128xbf16>, vector<32x128xf32> -> vector<32x128xf32>
    %11 = vector.shape_cast %10 : vector<32x128xf32> to vector<2x16x128xf32>
    %c0_10 = arith.constant 0 : index
    %c8 = arith.constant 8 : index
    %c0_11 = arith.constant 0 : index
    %12 = vector.load %arg4[%c0_10, %c8, %c0_11] : memref<2x24x128xf32, #tpu.memory_space<vmem>>, vector<2x16x128xf32>
    tpu.vector_store %arg4[%c0_10, %c8, %c0_11], %11 {strides = array<i32>} : memref<2x24x128xf32, #tpu.memory_space<vmem>>, vector<2x16x128xf32>,
    %13 = tpu.iota {dimensions = array<i32: 1>} : vector<1x24x1xi32>
    %c16_i32 = arith.constant 16 : i32
    %14 = arith.muli %arg0, %c16_i32 : i32
    %c8_i32 = arith.constant 8 : i32
    %15 = arith.subi %14, %c8_i32 : i32
    %16 = vector.broadcast %15 : i32 to vector<1x24x1xi32>
    %17 = arith.addi %16, %13 : vector<1x24x1xi32>
    %c0_i32 = arith.constant 0 : i32
    %18 = vector.broadcast %c0_i32 : i32 to vector<1x24x1xi32>
    %19 = arith.cmpi sge, %17, %18 : vector<1x24x1xi32>
    %c8_i32_12 = arith.constant 8 : i32
    %20 = vector.broadcast %c8_i32_12 : i32 to vector<1x24x1xi32>
    %21 = arith.cmpi slt, %17, %20 : vector<1x24x1xi32>
    %22 = arith.andi %19, %21 : vector<1x24x1xi1>
    %c0_13 = arith.constant 0 : index
    %c0_14 = arith.constant 0 : index
    %c0_15 = arith.constant 0 : index
    %23 = vector.load %arg4[%c0_13, %c0_14, %c0_15] : memref<2x24x128xf32, #tpu.memory_space<vmem>>, vector<2x24x128xf32>
    %cst_16 = arith.constant 0.000000e+00 : f32
    %24 = vector.shape_cast %22 : vector<1x24x1xi1> to vector<1x24x1xi1>
    %25 = vector.broadcast %24 : vector<1x24x1xi1> to vector<2x24x128xi1>
    %26 = vector.broadcast %cst_16 : f32 to vector<2x24x128xf32>
    %27 = arith.select %25, %23, %26 : vector<2x24x128xi1>, vector<2x24x128xf32>
    %28 = vector.extract_strided_slice %27 {offsets = [0, 7, 0], sizes = [2, 16, 128], strides = [1, 1, 1]} : vector<2x24x128xf32> to vector<2x16x128xf32>
    %29 = vector.extract_strided_slice %27 {offsets = [0, 8, 0], sizes = [2, 16, 128], strides = [1, 1, 1]} : vector<2x24x128xf32> to vector<2x16x128xf32>
    %30 = arith.addf %28, %29 : vector<2x16x128xf32>
    %c16_i32_17 = arith.constant 16 : i32
    %31 = arith.muli %arg0, %c16_i32_17 : i32
    %32 = tpu.iota {dimensions = array<i32: 1>} : vector<1x16x1xi32>
    %33 = vector.broadcast %31 : i32 to vector<1x16x1xi32>
    %34 = arith.addi %33, %32 : vector<1x16x1xi32>
    %c1_i32 = arith.constant 1 : i32
    %35 = vector.broadcast %c1_i32 : i32 to vector<1x16x1xi32>
    %36 = arith.subi %35, %34 : vector<1x16x1xi32>
    %c0_i32_18 = arith.constant 0 : i32
    %37 = vector.broadcast %c0_i32_18 : i32 to vector<1x16x1xi32>
    %38 = arith.maxsi %36, %37 : vector<1x16x1xi32>
    %c8_i32_19 = arith.constant 8 : i32
    %39 = vector.broadcast %c8_i32_19 : i32 to vector<1x16x1xi32>
    %40 = arith.muli %38, %39 : vector<1x16x1xi32>
    %41 = arith.sitofp %40 : vector<1x16x1xi32> to vector<1x16x1xf32>
    %42 = vector.extract_strided_slice %30 {offsets = [0, 0, 0], sizes = [2, 16, 1], strides = [1, 1, 1]} : vector<2x16x128xf32> to vector<2x16x1xf32>
    %43 = vector.broadcast %41 : vector<1x16x1xf32> to vector<2x16x1xf32>
    %44 = arith.addf %42, %43 : vector<2x16x1xf32>
    %cst_20 = arith.constant 1.600000e+01 : f32
    %45 = vector.broadcast %cst_20 : f32 to vector<2x16x1xf32>
    %46 = arith.divf %44, %45 : vector<2x16x1xf32>
    %47 = math.ceil %46 : vector<2x16x1xf32>
    %c0_21 = arith.constant 0 : index
    %c0_22 = arith.constant 0 : index
    %c0_23 = arith.constant 0 : index
    %48 = vector.load %arg3[%c0_21, %c0_22, %c0_23] : memref<2x16x1xf32, #tpu.memory_space<vmem>>, vector<2x16x1xf32>
    tpu.vector_store %arg3[%c0_21, %c0_22, %c0_23], %47 {strides = array<i32>} : memref<2x16x1xf32, #tpu.memory_space<vmem>>, vector<2x16x1xf32>,
    return
  }
  func.func @transform_0(%arg0: i32) -> (i32, i32, i32) {
    %c2_i32 = arith.constant 2 : i32
    %0 = arith.muli %arg0, %c2_i32 : i32
    %c1_i32 = arith.constant 1 : i32
    %1 = arith.subi %0, %c1_i32 : i32
    %c0_i32 = arith.constant 0 : i32
    %2 = arith.maxsi %1, %c0_i32 : i32
    %c0_i32_0 = arith.constant 0 : i32
    %3 = arith.minsi %2, %c0_i32_0 : i32
    %c0_i32_1 = arith.constant 0 : i32
    %c0_i32_2 = arith.constant 0 : i32
    %c0_i32_3 = arith.constant 0 : i32
    return %c0_i32_1, %3, %c0_i32_2 : i32, i32, i32
  }
  func.func @transform_1(%arg0: i32) -> (i32, i32, i32) {
    %c0_i32 = arith.constant 0 : i32
    %0 = arith.minsi %arg0, %c0_i32 : i32
    %c0_i32_0 = arith.constant 0 : i32
    %c0_i32_1 = arith.constant 0 : i32
    %c0_i32_2 = arith.constant 0 : i32
    return %c0_i32_0, %0, %c0_i32_1 : i32, i32, i32
  }
  func.func @transform_2(%arg0: i32) -> (i32, i32, i32) {
    %c0_i32 = arith.constant 0 : i32
    %c0_i32_0 = arith.constant 0 : i32
    %c0_i32_1 = arith.constant 0 : i32
    return %c0_i32, %arg0, %c0_i32_0 : i32, i32, i32
  }
}

</mosaic_0001>

<llo_original>
// kernel: spectrogram_mask.1
$region0: #{spectrogram_mask.1}
  #allocation0 [shape = 'u32[]', space=smem, size = 0x4, offset = 0x4, fixed_abs, tag = 'smem constant byte address 0x4 - core index']
  #allocation1 [shape = 'u32[144,128]{1,0:T(1,128)}', space=vmem, size = 0x12000, scoped, tag = 'internal scratch']
  #allocation2 [shape = 'f32[2,24,128]{2,1,0:T(8,128)}', space=vmem, size = 0x6000, scoped, tag = 'scratch operand']
  %s0 = inlined_call_operand.vmem [shape: f32[2,8,8], index: 0, kind: input, shape index: {}, may-alias: {0,1}]
  %s1 = inlined_call_operand.vmem [shape: f32[2,8,8], index: 1, kind: input, shape index: {}, may-alias: {0,1}]
  %s2 = inlined_call_operand.vmem [shape: f32[2,16,1], index: 2, kind: output, shape index: {}]
  %s3 = sld [smem:[#allocation0]]
  $region56: #{spectrogram_mask.1} parent=0
    _
  %s5 = ssub.s32 1, %s3
  %s6 = scalar_select 0, %s5, %s3
  $region1: #{spectrogram_mask.1} parent=0
    #allocation3 [shape = 'u8[16384]{0}', space=vmem, size = 0x4000, scoped, tag = 'input window, operand 1, single buffered']
    // Predicated region
    $region2: #{spectrogram_mask.1} parent=1 // pred_check
      _
    $region3: #{spectrogram_mask.1} parent=1 // pred_check_branch
      %8 = sbr.rel (0) target = $region5
    $region4: #{spectrogram_mask.1} parent=1 // pred_region
      %s9 = smul.u32 0, 2
      %s10 = ssub.s32 %s9, 1
      %p11 = scmp.gt.s32.totalorder %s10, 0
      %s12 = scalar_select %p11, %s10, 0
      %p13 = scmp.lt.s32.totalorder %s12, 0
      %s14 = scalar_select %p13, %s12, 0
      %p15 = scmp.lt.s32.totalorder %s14, 0
      %s16 = scalar_select %p15, %s14, 0
      %s17 = smul.addr %s16, 8
      %s18 = scalar_lea.vmem %s0, %s17
      %s19 = smul.u32 0, 2
      %s20 = ssub.s32 %s19, 1
      %p21 = scmp.gt.s32.totalorder %s20, 0
      %s22 = scalar_select %p21, %s20, 0
      %p23 = scmp.lt.s32.totalorder %s22, 0
      %s24 = scalar_select %p23, %s22, 0
    $region5: #{spectrogram_mask.1} parent=1 // pred_fallthru
      _
    // Predicated region
    $region6: #{spectrogram_mask.1} parent=1 // pred_check
      _
    $region7: #{spectrogram_mask.1} parent=1 // pred_check_branch
      %26 = sbr.rel (0) target = $region9
    $region8: #{spectrogram_mask.1} parent=1 // pred_region
      // Predicated region
      $region10: #{spectrogram_mask.1} parent=8 // pred_check
        _
      $region11: #{spectrogram_mask.1} parent=8 // pred_check_branch
        %28 = sbr.rel (0) target = $region13
      $region12: #{spectrogram_mask.1} parent=8 // pred_region
        // Predicated region
        $region14: #{spectrogram_mask.1} parent=12 // pred_check
          _
        $region15: #{spectrogram_mask.1} parent=12 // pred_check_branch
          %30 = sbr.rel (0) target = $region17
        $region16: #{spectrogram_mask.1} parent=12 // pred_region
          // Predicated region
          $region29: #{spectrogram_mask.1} parent=16 // pred_check
            _
          $region30: #{spectrogram_mask.1} parent=16 // pred_check_branch
            %47 = sbr.rel (0) target = $region32
          $region31: #{spectrogram_mask.1} parent=16 // pred_region
            loop: start=0, step=1, limit=1
            $region33: #{spectrogram_mask.1} parent=31 // loop_pre_header
              _
            $region34: #{spectrogram_mask.1} parent=31 // loop_header
              %s49 = sphi 0, %s53
              %p50 = scmp.ge.s32.totalorder %s49, 1
              %s54 = sphi %s1, %s1
              %s55 = sphi [#allocation3], [#allocation3]
            $region35: #{spectrogram_mask.1} parent=31 // loop_header_branch
              %52 = sbr.rel (%p50) target = $region39
            $region36: #{spectrogram_mask.1} parent=31 // loop_body
              %v56 = vld [vmem:[%s54] sm:$0xff]
              %57 = vst [vmem:[%s55] sm:$0xff] %v56
              %v58 = vld [vmem:[%s54 + $0x8] sm:$0xff]
              %59 = vst [vmem:[%s55 + $0x10] sm:$0xff] %v58
            $region37: #{spectrogram_mask.1} parent=31 // loop_footer
              %s53 = sadd.s32 1, %s49
            $region38: #{spectrogram_mask.1} parent=31 // loop_footer_branch
              %48 = sbr.rel target = $region34
            $region39: #{spectrogram_mask.1} parent=31 // loop_exit
              _
          $region32: #{spectrogram_mask.1} parent=16 // pred_fallthru
            _
          // Predicated region
          $region40: #{spectrogram_mask.1} parent=16 // pred_check
            _
          $region41: #{spectrogram_mask.1} parent=16 // pred_check_branch
            %61 = sbr.rel target = $region43
          $region42: #{spectrogram_mask.1} parent=16 // pred_region
            _
          $region43: #{spectrogram_mask.1} parent=16 // pred_fallthru
            _
        $region17: #{spectrogram_mask.1} parent=12 // pred_fallthru
          _
        // Predicated region
        $region18: #{spectrogram_mask.1} parent=12 // pred_check
          _
        $region19: #{spectrogram_mask.1} parent=12 // pred_check_branch
          %32 = sbr.rel target = $region21
        $region20: #{spectrogram_mask.1} parent=12 // pred_region
          loop: start=0, step=1, limit=1
          $region22: #{spectrogram_mask.1} parent=20 // loop_pre_header
            _
          $region23: #{spectrogram_mask.1} parent=20 // loop_header
            %s35 = sphi 0, %s39
            %p36 = scmp.ge.s32.totalorder %s35, 1
            %s40 = sphi %s1, %s1
            %s41 = sphi [#allocation3], [#allocation3]
          $region24: #{spectrogram_mask.1} parent=20 // loop_header_branch
            %38 = sbr.rel (%p36) target = $region28
          $region25: #{spectrogram_mask.1} parent=20 // loop_body
            %v42 = vld [vmem:[%s40] sm:$0xff]
            %43 = vst [vmem:[%s41] sm:$0xff] %v42
            %v44 = vld [vmem:[%s40 + $0x8] sm:$0xff]
            %45 = vst [vmem:[%s41 + $0x10] sm:$0xff] %v44
          $region26: #{spectrogram_mask.1} parent=20 // loop_footer
            %s39 = sadd.s32 1, %s35
          $region27: #{spectrogram_mask.1} parent=20 // loop_footer_branch
            %34 = sbr.rel target = $region23
          $region28: #{spectrogram_mask.1} parent=20 // loop_exit
            _
        $region21: #{spectrogram_mask.1} parent=12 // pred_fallthru
          _
      $region13: #{spectrogram_mask.1} parent=8 // pred_fallthru
        _
      %62 = vnop
    $region9: #{spectrogram_mask.1} parent=1 // pred_fallthru
      _
    // Predicated region
    $region44: #{spectrogram_mask.1} parent=1 // pred_check
      _
    $region45: #{spectrogram_mask.1} parent=1 // pred_check_branch
      %64 = sbr.rel (0) target = $region47
    $region46: #{spectrogram_mask.1} parent=1 // pred_region
      _
    $region47: #{spectrogram_mask.1} parent=1 // pred_fallthru
      _
    %s65 = smul.u32 0, 2
    %s66 = ssub.s32 %s65, 1
    %p67 = scmp.gt.s32.totalorder %s66, 0
    %s68 = scalar_select %p67, %s66, 0
    %p69 = scmp.lt.s32.totalorder %s68, 0
    %s70 = scalar_select %p69, %s68, 0
    %p71 = scmp.lt.s32.totalorder %s70, 0
    %s72 = scalar_select %p71, %s70, 0
    %s73 = smul.addr %s72, 8
    %s74 = scalar_lea.vmem %s0, %s73
    %s75 = smul.u32 0, 2
    %s76 = ssub.s32 %s75, 1
    %p77 = scmp.gt.s32.totalorder %s76, 0
    %s78 = scalar_select %p77, %s76, 0
    %p79 = scmp.lt.s32.totalorder %s78, 0
    %s80 = scalar_select %p79, %s78, 0
    %p81 = scmp.lt.s32.totalorder %s80, 0
    %s82 = scalar_select %p81, %s80, 0
    %s83 = smul.addr %s82, 8
    %s84 = scalar_lea.vmem %s0, %s83
    %s85 = smul.u32 0, 2
    %s86 = ssub.s32 %s85, 1
    %p87 = scmp.gt.s32.totalorder %s86, 0
    %s88 = scalar_select %p87, %s86, 0
    %p89 = scmp.lt.s32.totalorder %s88, 0
    %s90 = scalar_select %p89, %s88, 0
    %v93 = vld [vmem:[%s84] sm:$0xff]
    %v94 = vld [vmem:[%s84 + $0x8] sm:$0xff]
    %v95 = vpack.c.bf16 %v94, %v93
    %vm96 = vcmask 64512
    %v98 = vsel %vm96, %v95, 0
    %vm100 = vcmask 1043456
    %v102 = vsel %vm100, 1065369472, 0
    %104 = vmatprep.subr.bf16.mxu0 0
    %105 = vmatpush1.bf16.msra.mxu0 %v102
    %106 = vmatprep.subr.bf16.mxu0 0
    %107 = vmatpush1.bf16.msra.mxu0 0
    %108 = vmatprep.subr.bf16.mxu0 0
    %109 = vmatpush1.bf16.msra.mxu0 0
    %110 = vmatprep.subr.bf16.mxu0 0
    %111 = vmatpush1.bf16.msra.mxu0 0
    %112 = vmatprep.subr.bf16.mxu0 0
    %113 = vmatpush1.bf16.msra.mxu0 0
    %114 = vmatprep.subr.bf16.mxu0 0
    %115 = vmatpush1.bf16.msra.mxu0 0
    %116 = vmatprep.subr.bf16.mxu0 0
    %117 = vmatpush1.bf16.msra.mxu0 0
    %118 = vmatprep.subr.bf16.mxu0 0
    %119 = vmatpush1.bf16.msra.mxu0 0
    %120 = vmatprep.subr.bf16.mxu0 0
    %121 = vmatpush1.bf16.msra.mxu0 0
    %122 = vmatprep.subr.bf16.mxu0 0
    %123 = vmatpush1.bf16.msra.mxu0 0
    %124 = vmatprep.subr.bf16.mxu0 0
    %125 = vmatpush1.bf16.msra.mxu0 0
    %126 = vmatprep.subr.bf16.mxu0 0
    %127 = vmatpush1.bf16.msra.mxu0 0
    %128 = vmatprep.subr.bf16.mxu0 0
    %129 = vmatpush1.bf16.msra.mxu0 0
    %130 = vmatprep.subr.bf16.mxu0 0
    %131 = vmatpush1.bf16.msra.mxu0 0
    %132 = vmatprep.subr.bf16.mxu0 0
    %133 = vmatpush1.bf16.msra.mxu0 0
    %134 = vmatprep.subr.bf16.mxu0 0
    %135 = vmatpush1.bf16.msra.mxu0 0
    %136 = vmatprep.mubr.bf16.mxu0 0
    %137 = vmatmul.mubr.bf16.gmra.mrb[0].mxu0 %v98
    %v138 = vpop.f32.mrb[0].mxu0
    %v139 = vadd.f32 0.0, %v138
    %v140 = vpop.f32.mrb[0].mxu0
    %v141 = vpop.f32.mrb[0].mxu0
    %v142 = vadd.f32 0.0, %v141
    %v143 = vpop.f32.mrb[0].mxu0
    %144 = vdwg.mxu0
    %145 = vst [vmem:[#allocation2] sm:$0xff] %v139
    %146 = vst [vmem:[#allocation2 + $0x18] sm:$0xff] %v142
    %v147 = vld [vmem:[#allocation3] sm:$0xff]
    %v148 = vld [vmem:[#allocation3 + $0x8] sm:$0xff]
    %v149 = vld [vmem:[#allocation3 + $0x10] sm:$0xff]
    %v150 = vld [vmem:[#allocation3 + $0x18] sm:$0xff]
    %v151 = vpack.c.bf16 %v148, %v147
    %v152 = vpack.c.bf16 %v150, %v149
    %v154 = vsel %vm96, %v151, 0
    %v157 = vsel %vm96, %v152, 0
    %159 = vmatprep.subr.bf16.mxu0 0
    %160 = vmatpush1.bf16.msra.mxu0 %v102
    %161 = vmatprep.subr.bf16.mxu0 0
    %162 = vmatpush1.bf16.msra.mxu0 0
    %163 = vmatprep.subr.bf16.mxu0 0
    %164 = vmatpush1.bf16.msra.mxu0 0
    %165 = vmatprep.subr.bf16.mxu0 0
    %166 = vmatpush1.bf16.msra.mxu0 0
    %167 = vmatprep.subr.bf16.mxu0 0
    %168 = vmatpush1.bf16.msra.mxu0 0
    %169 = vmatprep.subr.bf16.mxu0 0
    %170 = vmatpush1.bf16.msra.mxu0 0
    %171 = vmatprep.subr.bf16.mxu0 0
    %172 = vmatpush1.bf16.msra.mxu0 0
    %173 = vmatprep.subr.bf16.mxu0 0
    %174 = vmatpush1.bf16.msra.mxu0 0
    %175 = vmatprep.subr.bf16.mxu0 0
    %176 = vmatpush1.bf16.msra.mxu0 0
    %177 = vmatprep.subr.bf16.mxu0 0
    %178 = vmatpush1.bf16.msra.mxu0 0
    %179 = vmatprep.subr.bf16.mxu0 0
    %180 = vmatpush1.bf16.msra.mxu0 0
    %181 = vmatprep.subr.bf16.mxu0 0
    %182 = vmatpush1.bf16.msra.mxu0 0
    %183 = vmatprep.subr.bf16.mxu0 0
    %184 = vmatpush1.bf16.msra.mxu0 0
    %185 = vmatprep.subr.bf16.mxu0 0
    %186 = vmatpush1.bf16.msra.mxu0 0
    %187 = vmatprep.subr.bf16.mxu0 0
    %188 = vmatpush1.bf16.msra.mxu0 0
    %189 = vmatprep.subr.bf16.mxu0 0
    %190 = vmatpush1.bf16.msra.mxu0 0
    %191 = vmatprep.mubr.bf16.mxu0 0
    %192 = vmatmul.mubr.bf16.gmra.mrb[0].mxu0 %v154
    %v193 = vpop.f32.mrb[0].mxu0
    %v194 = vadd.f32 0.0, %v193
    %v195 = vpop.f32.mrb[0].mxu0
    %v196 = vpop.f32.mrb[0].mxu0
    %v197 = vadd.f32 0.0, %v196
    %v198 = vpop.f32.mrb[0].mxu0
    %199 = vmatprep.mubr.bf16.mxu0 0
    %200 = vmatmul.mubr.bf16.gmra.mrb[0].mxu0 %v157
    %v201 = vpop.f32.mrb[0].mxu0
    %v202 = vadd.f32 0.0, %v201
    %v203 = vpop.f32.mrb[0].mxu0
    %v204 = vpop.f32.mrb[0].mxu0
    %v205 = vadd.f32 0.0, %v204
    %v206 = vpop.f32.mrb[0].mxu0
    %207 = vdwg.mxu0
    %208 = vst [vmem:[#allocation2 + $0x8] sm:$0xff] %v194
    %209 = vst [vmem:[#allocation2 + $0x10] sm:$0xff] %v197
    %210 = vst [vmem:[#allocation2 + $0x20] sm:$0xff] %v202
    %211 = vst [vmem:[#allocation2 + $0x28] sm:$0xff] %v205
    %v212 = vlaneseq
    %v213 = vshrl.u32 %v212, 7
    %v214 = vadd.s32 %v213, 8
    %v215 = vadd.s32 %v213, 16
    %s216 = smul.u32 0, 16
    %s217 = ssub.s32 %s216, 8
    %v218 = vstv %s217
    %v219 = vadd.s32 %v218, %v213
    %v220 = vadd.s32 %v218, %v214
    %v221 = vadd.s32 %v218, %v215
    %vm222 = vcmp.ge.s32.totalorder %v219, 0
    %vm223 = vcmp.ge.s32.totalorder %v220, 0
    %vm224 = vcmp.ge.s32.totalorder %v221, 0
    %vm225 = vcmp.lt.s32.totalorder %v219, 8
    %vm226 = vcmp.lt.s32.totalorder %v220, 8
    %vm227 = vcmp.lt.s32.totalorder %v221, 8
    %vm228 = vmand %vm222, %vm225
    %vm229 = vmand %vm223, %vm226
    %vm230 = vmand %vm224, %vm227
    %v231 = vld [vmem:[#allocation2] sm:$0xff]
    %v232 = vld [vmem:[#allocation2 + $0x8] sm:$0xff]
    %v233 = vld [vmem:[#allocation2 + $0x10] sm:$0xff]
    %v234 = vld [vmem:[#allocation2 + $0x18] sm:$0xff]
    %v235 = vld [vmem:[#allocation2 + $0x20] sm:$0xff]
    %v236 = vld [vmem:[#allocation2 + $0x28] sm:$0xff]
    %v237 = vsel %vm228, 1, 0
    %v238 = vsel %vm229, 1, 0
    %v239 = vsel %vm230, 1, 0
    %vm240 = vcmp.eq.s32.totalorder %v237, 1
    %vm241 = vcmp.eq.s32.totalorder %v238, 1
    %vm242 = vcmp.eq.s32.totalorder %v239, 1
    %v243 = vsel %vm240, %v231, 0.0
    %v244 = vsel %vm241, %v232, 0.0
    %v245 = vsel %vm242, %v233, 0.0
    %v246 = vsel %vm240, %v234, 0.0
    %v247 = vsel %vm241, %v235, 0.0
    %v248 = vsel %vm242, %v236, 0.0
    %vm253 = vcmask 1046528
    %v254 = vrot.slane %v244, 1
    %v255 = vrot.slane %v245, 1
    %v256 = vsel %vm253, %v254, %v255
    %v257 = vrot.slane %v247, 1
    %v258 = vrot.slane %v248, 1
    %v259 = vsel %vm253, %v257, %v258
    %v266 = vadd.f32 %v243, %v254
    %v267 = vadd.f32 %v244, %v256
    %v268 = vadd.f32 %v245, %v255
    %v269 = vadd.f32 %v246, %v257
    %v270 = vadd.f32 %v247, %v259
    %v271 = vadd.f32 %v248, %v258
    %v272 = vstv %s216
    %v273 = vadd.s32 %v272, %v213
    %v274 = vadd.s32 %v272, %v214
    %v275 = vsub.s32 1, %v273
    %v276 = vsub.s32 1, %v274
    %vm277 = vcmp.gt.s32.totalorder %v275, 0
    %v278 = vsel %vm277, %v275, 0
    %vm279 = vcmp.gt.s32.totalorder %v276, 0
    %v280 = vsel %vm279, %v276, 0
    %v281 = vmul.u32 %v278, 8
    %v282 = vmul.u32 %v280, 8
    %v283 = vcvt.s32.f32 %v281
    %v284 = vcvt.s32.f32 %v282
    %v287 = vrot.slane %v283, 1
    %v288 = vrot.slane %v284, 1
    %v289 = vsel %vm253, %v287, %v288
    %v293 = vadd.f32 %v266, %v287
    %v294 = vadd.f32 %v267, %v289
    %v295 = vadd.f32 %v268, %v288
    %v296 = vadd.f32 %v269, %v287
    %v297 = vadd.f32 %v270, %v289
    %v298 = vadd.f32 %v271, %v288
    %v299 = vrcp.pop 16.0
    %v300 = vmul.f32 %v293, %v299
    %v301 = vmul.f32 %v294, %v299
    %v302 = vmul.f32 %v295, %v299
    %v303 = vmul.f32 %v296, %v299
    %v304 = vmul.f32 %v297, %v299
    %v305 = vmul.f32 %v298, %v299
    %v306 = vceil.f32 %v300
    %v307 = vceil.f32 %v301
    %v308 = vceil.f32 %v302
    %v309 = vceil.f32 %v303
    %v310 = vceil.f32 %v304
    %v311 = vceil.f32 %v305
    %vm312 = vcmask 7175
    %313 = vst.msk [vmem:[%s2 - $0x7] sm:$0x80] %vm312, %v306
    %vm314 = vcmask 7168
    %315 = vst.msk [vmem:[%s2 + $0x1] sm:$0xff] %vm314, %v307
    %vm316 = vcmask 6144
    %317 = vst.msk [vmem:[%s2 + $0x9] sm:$0x7f] %vm316, %v308
    %318 = vst.msk [vmem:[%s2 + $0x9] sm:$0x80] %vm312, %v309
    %319 = vst.msk [vmem:[%s2 + $0x11] sm:$0xff] %vm314, %v310
    %320 = vst.msk [vmem:[%s2 + $0x19] sm:$0x7f] %vm316, %v311
    // Predicated region
    $region48: #{spectrogram_mask.1} parent=1 // pred_check
      _
    $region49: #{spectrogram_mask.1} parent=1 // pred_check_branch
      %322 = sbr.rel (0) target = $region51
    $region50: #{spectrogram_mask.1} parent=1 // pred_region
      _
    $region51: #{spectrogram_mask.1} parent=1 // pred_fallthru
      _
    // Predicated region
    $region52: #{spectrogram_mask.1} parent=1 // pred_check
      _
    $region53: #{spectrogram_mask.1} parent=1 // pred_check_branch
      %324 = sbr.rel (0) target = $region55
    $region54: #{spectrogram_mask.1} parent=1 // pred_region
      _
    $region55: #{spectrogram_mask.1} parent=1 // pred_fallthru
      _

</llo_original>
